<compile_context>
chip_gen: v6e
topology: v6e:2x2x1
jax: 0.10.0
libtpu: 0.0.40
codegen_flags: <defaults>
</compile_context>

<pallas_src>
import functools
import math

import jax
import jax.numpy as jnp
from jax.experimental import pallas as pl
from jax.experimental.pallas import tpu as pltpu

BN_EPS = 1e-5
_VMEM_LIMIT = 48 * 1024 * 1024   # explicit budget; safe under v7x's 64 MiB


# ----------------------------- tile selection -------------------------------

def _pick_tm(M):
    """M tile: cap at M//2 when M >= 128 so the (i, j) grid has >= 2 programs
    (both v7x TensorCores busy); otherwise take the full dim."""
    if M >= 128:
        for t in (256, 128, 64, 32, 16, 8):
            if t <= M // 2 and M % t == 0:
                return t
    return M


def _pick_tn(N):
    """N tile: prefer 256 over 384 (full 2x256 MXU column occupancy on
    v6e/v7x and gn > 1 for megacore splitting); else the full dim."""
    for t in (512, 256, 384, 128):
        if t <= N and N % t == 0:
            return t
    return N


def _pick_k(K, single_shot_max=8192, tk_max=2048):
    """Returns (tk, padded_K, num_k_steps).  Single-shot (no scratch, no
    K padding) whenever the K slab still fits comfortably in VMEM."""
    if K <= single_shot_max:
        return K, K, 1
    for tk in range(tk_max, 127, -128):          # multiples of 128 dividing K
        if K % tk == 0:
            return tk, K, K // tk
    tk = 512                                      # fallback: minimal padding
    Kp = pl.cdiv(K, tk) * tk
    return tk, Kp, Kp // tk


# ------------------------- fused matmul Pallas kernel ------------------------

def _mm_kernel(*refs, nk, has_sb, has_res, has_down, relu, dual):
    a_ref, b_ref = refs[0], refs[1]
    idx = 2
    s_ref = c_ref = r_ref = xd_ref = wd_ref = None
    if has_sb:
        s_ref, c_ref = refs[idx], refs[idx + 1]
        idx += 2
    if has_res:
        r_ref = refs[idx]
        idx += 1
    if has_down:
        xd_ref, wd_ref = refs[idx], refs[idx + 1]
        idx += 2
    if dual:
        oraw_ref, oact_ref = refs[idx], refs[idx + 1]
        idx += 2
    else:
        o_ref = refs[idx]
        idx += 1
    acc_ref = refs[idx] if nk > 1 else None

    def epilogue(y):
        if has_res:                       # fused residual add (f32)
            y = y + r_ref[...].astype(jnp.float32)
        if has_down:                      # fused 1x1 downsample conv residual
            y = y + jnp.dot(xd_ref[...], wd_ref[...],
                            preferred_element_type=jnp.float32)
        if dual:
            # raw pre-activation (residual / downsample input of next block)
            oraw_ref[...] = y.astype(oraw_ref.dtype)
            # next block's bn1 (or the final bn) + ReLU, fused
            z = y * s_ref[...] + c_ref[...]
            oact_ref[...] = jnp.maximum(z, 0.0).astype(oact_ref.dtype)
        else:
            if has_sb:                    # folded BatchNorm scale/bias
                y = y * s_ref[...] + c_ref[...]
            if relu:
                y = jnp.maximum(y, 0.0)
            o_ref[...] = y.astype(o_ref.dtype)

    if nk == 1:
        # single-shot K: no accumulator scratch, no init/finalize pl.when
        epilogue(jnp.dot(a_ref[...], b_ref[...],
                         preferred_element_type=jnp.float32))
    else:
        k = pl.program_id(2)

        @pl.when(k == 0)
        def _():
            acc_ref[...] = jnp.zeros_like(acc_ref)

        acc_ref[...] += jnp.dot(a_ref[...], b_ref[...],
                                preferred_element_type=jnp.float32)

        @pl.when(k == pl.num_programs(2) - 1)
        def _():
            epilogue(acc_ref[...])


def matmul_fused(a, b, scale=None, bias=None, residual=None, down=None,
                 relu=False, dual=False, out_dtype=jnp.bfloat16):
    """(M, K) @ (K, N) in bf16 with f32 accumulation and fused epilogues:
       * scale/bias : folded BatchNorm per-channel affine (+ optional ReLU)
       * residual   : (M, N) tensor added in f32
       * down       : (xd, wd) 1x1 downsample matmul computed in-kernel, f32 add
       * dual       : emit (raw, relu(raw*scale+bias)) -- fuses the NEXT
                      block's bn1+ReLU into this matmul's epilogue."""
    M, K = a.shape
    K2, N = b.shape
    assert K == K2
    has_sb = scale is not None
    has_res = residual is not None
    has_down = down is not None
    assert not (has_res and has_down)
    if dual:
        assert has_sb

    tm = _pick_tm(M)
    tn = _pick_tn(N)
    tk, Kp, nk = _pick_k(K)
    if Kp != K:  # rare fallback; zero-pad reduction dim (product unchanged)
        a = jnp.pad(a, ((0, 0), (0, Kp - K)))
        b = jnp.pad(b, ((0, Kp - K), (0, 0)))
    gm, gn = M // tm, N // tn

    if nk == 1:
        grid = (gm, gn)
        dims = ("parallel", "parallel")
        a_spec = pl.BlockSpec((tm, Kp), lambda i, j: (i, 0))
        b_spec = pl.BlockSpec((Kp, tn), lambda i, j: (0, j))
        vec_spec = lambda: pl.BlockSpec((1, tn), lambda i, j: (0, j))
        mn_spec = lambda: pl.BlockSpec((tm, tn), lambda i, j: (i, j))
        row_spec = lambda c: pl.BlockSpec((tm, c), lambda i, j: (i, 0))
        col_spec = lambda r: pl.BlockSpec((r, tn), lambda i, j: (0, j))
        scratch = ()
    else:
        grid = (gm, gn, nk)
        dims = ("parallel", "parallel", "arbitrary")
        a_spec = pl.BlockSpec((tm, tk), lambda i, j, k: (i, k))
        b_spec = pl.BlockSpec((tk, tn), lambda i, j, k: (k, j))
        vec_spec = lambda: pl.BlockSpec((1, tn), lambda i, j, k: (0, j))
        mn_spec = lambda: pl.BlockSpec((tm, tn), lambda i, j, k: (i, j))
        row_spec = lambda c: pl.BlockSpec((tm, c), lambda i, j, k: (i, 0))
        col_spec = lambda r: pl.BlockSpec((r, tn), lambda i, j, k: (0, j))
        scratch = (pltpu.VMEM((tm, tn), jnp.float32),)

    inputs = [a, b]
    in_specs = [a_spec, b_spec]
    if has_sb:
        inputs += [scale.reshape(1, N).astype(jnp.float32),
                   bias.reshape(1, N).astype(jnp.float32)]
        in_specs += [vec_spec(), vec_spec()]
    if has_res:
        inputs.append(residual.astype(jnp.bfloat16))
        in_specs.append(mn_spec())
    if has_down:
        xd, wd = down
        cd = xd.shape[1]
        inputs += [xd.astype(jnp.bfloat16), wd.astype(jnp.bfloat16)]
        in_specs += [row_spec(cd), col_spec(cd)]

    if dual:
        out_shape = (jax.ShapeDtypeStruct((M, N), out_dtype),
                     jax.ShapeDtypeStruct((M, N), out_dtype))
        out_specs = [mn_spec(), mn_spec()]
    else:
        out_shape = jax.ShapeDtypeStruct((M, N), out_dtype)
        out_specs = mn_spec()

    kernel = functools.partial(_mm_kernel, nk=nk, has_sb=has_sb,
                               has_res=has_res, has_down=has_down,
                               relu=relu, dual=dual)
    return pl.pallas_call(
        kernel,
        out_shape=out_shape,
        grid_spec=pltpu.PrefetchScalarGridSpec(
            num_scalar_prefetch=0,
            grid=grid,
            in_specs=in_specs,
            out_specs=out_specs,
            scratch_shapes=scratch),
        compiler_params=pltpu.CompilerParams(
            dimension_semantics=dims,
            vmem_limit_bytes=_VMEM_LIMIT),
    )(*inputs)


# ------------------- fused global-avg-pool + FC + bias -----------------------

def _pool_fc_kernel(x_ref, w_ref, b_ref, o_ref):
    pooled = jnp.mean(x_ref[...].astype(jnp.float32), axis=1)     # (N, C)
    o_ref[...] = (jnp.dot(pooled.astype(jnp.bfloat16), w_ref[...],
                          preferred_element_type=jnp.float32)
                  + b_ref[...])


def pool_fc(x_nhwc, fc_w, fc_b):
    """AdaptiveAvgPool2d(1) + flatten + Linear, fused in one kernel."""
    N, H, W, C = x_nhwc.shape
    x3 = x_nhwc.reshape(N, H * W, C)
    num_classes = fc_w.shape[1]
    return pl.pallas_call(
        _pool_fc_kernel,
        out_shape=jax.ShapeDtypeStruct((N, num_classes), jnp.float32),
        grid=(1,),
        in_specs=[pl.BlockSpec((N, H * W, C), lambda i: (0, 0, 0)),
                  pl.BlockSpec((C, num_classes), lambda i: (0, 0)),
                  pl.BlockSpec((1, num_classes), lambda i: (0, 0))],
        out_specs=pl.BlockSpec((N, num_classes), lambda i: (0, 0)),
        compiler_params=pltpu.CompilerParams(vmem_limit_bytes=_VMEM_LIMIT),
    )(x3, fc_w.astype(jnp.bfloat16), fc_b.reshape(1, num_classes))


# -------------------------- conv via im2col + MXU ----------------------------

def conv2d(x_nhwc, w_hwio, stride=1, pad=1, scale=None, bias=None,
           residual=None, down=None, relu=False, dual=False,
           out_dtype=jnp.bfloat16):
    """2D conv (bias-free) via bf16 im2col + one Pallas MXU matmul with fused
    BN-scale/bias, ReLU, residual-add or 1x1-downsample epilogues; `dual=True`
    additionally emits relu(scale*raw + bias) as a second output."""
    N, H, W, C = x_nhwc.shape
    kh, kw, cin, cout = w_hwio.shape
    assert cin == C
    xb = x_nhwc.astype(jnp.bfloat16)
    if kh == 1 and kw == 1 and pad == 0:
        xs = xb[:, ::stride, ::stride, :]
        Ho, Wo = xs.shape[1], xs.shape[2]
        cols = xs.reshape(N * Ho * Wo, cin)
    else:
        xp = jnp.pad(xb, ((0, 0), (pad, pad), (pad, pad), (0, 0)))
        Ho = (H + 2 * pad - kh) // stride + 1
        Wo = (W + 2 * pad - kw) // stride + 1
        parts = [xp[:, dy:dy + Ho * stride:stride,
                    dx:dx + Wo * stride:stride, :]
                 for dy in range(kh) for dx in range(kw)]
        cols = jnp.concatenate(parts, axis=-1).reshape(N * Ho * Wo,
                                                       kh * kw * cin)
    wmat = w_hwio.reshape(kh * kw * cin, cout).astype(jnp.bfloat16)
    res2 = residual.reshape(N * Ho * Wo, cout) if residual is not None else None
    out = matmul_fused(cols, wmat, scale=scale, bias=bias, residual=res2,
                       down=down, relu=relu, dual=dual, out_dtype=out_dtype)
    if dual:
        raw, act = out
        return raw.reshape(N, Ho, Wo, cout), act.reshape(N, Ho, Wo, cout)
    return out.reshape(N, Ho, Wo, cout)


# ------------------------------ parameters -----------------------------------

def conv_init(key, kh, kw, cin, cout):
    # PyTorch init: normal(0, sqrt(2 / (kh*kw*out_channels)))
    std = math.sqrt(2.0 / (kh * kw * cout))
    return std * jax.random.normal(key, (kh, kw, cin, cout), dtype=jnp.float32)


def bn_params(c):
    # weight=0.5, bias=0; eval-mode running stats mean=0, var=1 -> folded.
    scale = jnp.full((c,), 0.5 / math.sqrt(1.0 + BN_EPS), dtype=jnp.float32)
    bias = jnp.zeros((c,), dtype=jnp.float32)
    return scale, bias


def build_wrn_params(key, depth=14, num_classes=10):
    assert (depth - 2) % 6 == 0, "depth should be 6n+2"
    width = 12
    n = (depth - 2) // 6
    cfg = ([[16, 16 * width]] + [[16 * width, 16 * width]] * (n - 1)
           + [[16 * width, 32 * width]] + [[32 * width, 32 * width]] * (n - 1)
           + [[32 * width, 64 * width]] + [[64 * width, 64 * width]] * (n - 1)
           + [[64 * width]])
    cfg = [c for sub in cfg for c in sub]

    keys = iter(jax.random.split(key, 128))
    params = {}
    params["conv1"] = conv_init(next(keys), 3, 3, 3, 16)

    inplanes = 16

    def make_layer(planes, blocks, layer_cfg, stride):
        nonlocal inplanes
        blks = []
        for i in range(blocks):
            bcfg = layer_cfg[2 * i:2 * (i + 1)]
            s = stride if i == 0 else 1
            blk = {
                "stride": s,
                "bn1": bn_params(inplanes),
                # channel_selection(inplanes): indexes init to ones -> identity
                "conv1": conv_init(next(keys), 3, 3, bcfg[0], bcfg[1]),
                "bn2": bn_params(bcfg[1]),
                "conv2": conv_init(next(keys), 3, 3, bcfg[1], planes),
            }
            if i == 0 and (stride != 1 or inplanes != planes):
                blk["down"] = conv_init(next(keys), 1, 1, inplanes, planes)
            inplanes = planes
            blks.append(blk)
        return blks

    params["layer1"] = make_layer(16 * width, n, cfg[0:2 * n], 1)
    params["layer2"] = make_layer(32 * width, n, cfg[2 * n:4 * n], 2)
    params["layer3"] = make_layer(64 * width, n, cfg[4 * n:6 * n], 2)
    params["bn"] = bn_params(64 * width)

    fan_in = cfg[-1]
    bound = 1.0 / math.sqrt(fan_in)
    kw_, kb_ = jax.random.split(next(keys))
    params["fc_w"] = jax.random.uniform(kw_, (fan_in, num_classes),
                                        minval=-bound, maxval=bound,
                                        dtype=jnp.float32)
    params["fc_b"] = jax.random.uniform(kb_, (num_classes,),
                                        minval=-bound, maxval=bound,
                                        dtype=jnp.float32)
    return params


# -------------------------------- forward ------------------------------------

def basic_block_forward(x_raw, x_act, blk, next_scale, next_bias):
    """x_raw : raw (pre-bn1) block input (bf16 NHWC) -> residual / downsample
       x_act : relu(bn1(x_raw)), produced by the previous conv's epilogue
       Returns (raw_out, relu(next_bn(raw_out)))."""
    s = blk["stride"]
    # conv1 with bn2 + relu fused into the matmul epilogue
    out = conv2d(x_act, blk["conv1"], stride=s, pad=1,
                 scale=blk["bn2"][0], bias=blk["bn2"][1], relu=True)
    if "down" in blk:
        # fuse the 1x1 downsample conv into conv2's epilogue (extra matmul)
        cin = x_raw.shape[-1]
        cout = blk["conv2"].shape[-1]
        xd = x_raw[:, ::s, ::s, :].reshape(-1, cin)
        wd = blk["down"].reshape(cin, cout)
        return conv2d(out, blk["conv2"], stride=1, pad=1, down=(xd, wd),
                      scale=next_scale, bias=next_bias, dual=True)
    # identity residual, added (f32) inside conv2's epilogue
    return conv2d(out, blk["conv2"], stride=1, pad=1, residual=x_raw,
                  scale=next_scale, bias=next_bias, dual=True)


def wrn_forward(params, x_nchw):
    x = jnp.transpose(x_nchw, (0, 2, 3, 1))  # NCHW -> NHWC
    blocks = [blk for name in ("layer1", "layer2", "layer3")
              for blk in params[name]]
    # stem conv; its epilogue also emits relu(bn1_of_block0(.)) so no
    # standalone bn_relu kernel is ever launched.
    s0, b0 = blocks[0]["bn1"]
    x_raw, x_act = conv2d(x, params["conv1"], stride=1, pad=1,
                          scale=s0, bias=b0, dual=True)
    for i, blk in enumerate(blocks):
        if i + 1 < len(blocks):
            ns, nb = blocks[i + 1]["bn1"]
        else:
            ns, nb = params["bn"]     # final bn -> select(identity) -> relu
        x_raw, x_act = basic_block_forward(x_raw, x_act, blk, ns, nb)
    # AdaptiveAvgPool2d(1) + flatten + Linear, fused
    return pool_fc(x_act, params["fc_w"], params["fc_b"])


# ---------------------------------- main --------------------------------------

if __name__ == "__main__":
    key = jax.random.PRNGKey(0)
    kp, kx = jax.random.split(key)
    # Small config consistent with the module: depth=14 (6n+2, n=2), CIFAR-style
    # 3-channel input, batch=2, spatial 8x8.
    params = build_wrn_params(kp, depth=14, num_classes=10)
    x = jax.random.normal(kx, (2, 3, 8, 8), dtype=jnp.float32)  # NCHW like PyTorch
    out = wrn_forward(params, x)
    out = jax.block_until_ready(out)
    assert out.shape == (2, 10), out.shape
    print("KERNEL_OK")
</pallas_src>

<mosaic_0001>
module attributes {stable_mosaic.version = 11 : i64} {
  func.func @_mm_kernel(%arg0: i32, %arg1: i32, %arg2: memref<64x27xbf16, #tpu.memory_space<vmem>>, %arg3: memref<27x16xbf16, #tpu.memory_space<vmem>>, %arg4: memref<1x16xf32, #tpu.memory_space<vmem>>, %arg5: memref<1x16xf32, #tpu.memory_space<vmem>>, %arg6: memref<64x16xbf16, #tpu.memory_space<vmem>>, %arg7: memref<64x16xbf16, #tpu.memory_space<vmem>>) attributes {dimension_semantics = [#tpu.dimension_semantics<parallel>, #tpu.dimension_semantics<parallel>], iteration_bounds = array<i64: 2, 1>, scalar_prefetch = 0 : i64, scratch_operands = 0 : i64, tpu.core_type = #tpu.core_type<tc>, window_params = [{transform_indices = @transform_0, window_bounds = array<i64: 64, 27>}, {transform_indices = @transform_1, window_bounds = array<i64: 27, 16>}, {transform_indices = @transform_2, window_bounds = array<i64: 1, 16>}, {transform_indices = @transform_3, window_bounds = array<i64: 1, 16>}, {transform_indices = @transform_4, window_bounds = array<i64: 64, 16>}, {transform_indices = @transform_5, window_bounds = array<i64: 64, 16>}]} {
    %c0 = arith.constant 0 : index
    %c0_0 = arith.constant 0 : index
    %0 = vector.load %arg2[%c0, %c0_0] : memref<64x27xbf16, #tpu.memory_space<vmem>>, vector<64x27xbf16>
    %c0_1 = arith.constant 0 : index
    %c0_2 = arith.constant 0 : index
    %1 = vector.load %arg3[%c0_1, %c0_2] : memref<27x16xbf16, #tpu.memory_space<vmem>>, vector<27x16xbf16>
    %cst = arith.constant dense<0.000000e+00> : vector<64x16xf32>
    %2 = tpu.matmul %0, %1, %cst {dimension_numbers = #tpu.dot_dimension_numbers<[1], [0], [0], [1], [0, 0, 1, 1], [], []>} : vector<64x27xbf16>, vector<27x16xbf16>, vector<64x16xf32> -> vector<64x16xf32>
    %3 = arith.truncf %2 : vector<64x16xf32> to vector<64x16xbf16>
    %c0_3 = arith.constant 0 : index
    %c0_4 = arith.constant 0 : index
    %4 = vector.load %arg6[%c0_3, %c0_4] : memref<64x16xbf16, #tpu.memory_space<vmem>>, vector<64x16xbf16>
    tpu.vector_store %arg6[%c0_3, %c0_4], %3 {strides = array<i32>} : memref<64x16xbf16, #tpu.memory_space<vmem>>, vector<64x16xbf16>,
    %c0_5 = arith.constant 0 : index
    %c0_6 = arith.constant 0 : index
    %5 = vector.load %arg4[%c0_5, %c0_6] : memref<1x16xf32, #tpu.memory_space<vmem>>, vector<1x16xf32>
    %6 = vector.broadcast %5 : vector<1x16xf32> to vector<64x16xf32>
    %7 = arith.mulf %2, %6 : vector<64x16xf32>
    %c0_7 = arith.constant 0 : index
    %c0_8 = arith.constant 0 : index
    %8 = vector.load %arg5[%c0_7, %c0_8] : memref<1x16xf32, #tpu.memory_space<vmem>>, vector<1x16xf32>
    %9 = vector.broadcast %8 : vector<1x16xf32> to vector<64x16xf32>
    %10 = arith.addf %7, %9 : vector<64x16xf32>
    %cst_9 = arith.constant 0.000000e+00 : f32
    %11 = vector.broadcast %cst_9 : f32 to vector<64x16xf32>
    %12 = arith.maximumf %10, %11 : vector<64x16xf32>
    %13 = arith.truncf %12 : vector<64x16xf32> to vector<64x16xbf16>
    %c0_10 = arith.constant 0 : index
    %c0_11 = arith.constant 0 : index
    %14 = vector.load %arg7[%c0_10, %c0_11] : memref<64x16xbf16, #tpu.memory_space<vmem>>, vector<64x16xbf16>
    tpu.vector_store %arg7[%c0_10, %c0_11], %13 {strides = array<i32>} : memref<64x16xbf16, #tpu.memory_space<vmem>>, vector<64x16xbf16>,
    return
  }
  func.func @transform_0(%arg0: i32, %arg1: i32) -> (i32, i32) {
    %c0_i32 = arith.constant 0 : i32
    %c0_i32_0 = arith.constant 0 : i32
    return %arg0, %c0_i32 : i32, i32
  }
  func.func @transform_1(%arg0: i32, %arg1: i32) -> (i32, i32) {
    %c0_i32 = arith.constant 0 : i32
    %c0_i32_0 = arith.constant 0 : i32
    return %c0_i32, %arg1 : i32, i32
  }
  func.func @transform_2(%arg0: i32, %arg1: i32) -> (i32, i32) {
    %c0_i32 = arith.constant 0 : i32
    %c0_i32_0 = arith.constant 0 : i32
    return %c0_i32, %arg1 : i32, i32
  }
  func.func @transform_3(%arg0: i32, %arg1: i32) -> (i32, i32) {
    %c0_i32 = arith.constant 0 : i32
    %c0_i32_0 = arith.constant 0 : i32
    return %c0_i32, %arg1 : i32, i32
  }
  func.func @transform_4(%arg0: i32, %arg1: i32) -> (i32, i32) {
    %c0_i32 = arith.constant 0 : i32
    return %arg0, %arg1 : i32, i32
  }
  func.func @transform_5(%arg0: i32, %arg1: i32) -> (i32, i32) {
    %c0_i32 = arith.constant 0 : i32
    return %arg0, %arg1 : i32, i32
  }
}

</mosaic_0001>

<llo_original>
// kernel: tpu_custom_call.1
$region0: #{tpu_custom_call.1}
  #allocation0 [shape = 'u32[]', space=smem, size = 0x4, offset = 0x4, fixed_abs, tag = 'smem constant byte address 0x4 - core index']
  #allocation1 [shape = 'u32[144,128]{1,0:T(1,128)}', space=vmem, size = 0x12000, scoped, tag = 'internal scratch']
  %s0 = inlined_call_operand.vmem [shape: bf16[128,27], index: 0, kind: input, shape index: {}]
  %s1 = inlined_call_operand.vmem [shape: bf16[27,16], index: 1, kind: input, shape index: {}]
  %s2 = inlined_call_operand.vmem [shape: f32[1,16], index: 2, kind: input, shape index: {}]
  %s3 = inlined_call_operand.vmem [shape: f32[1,16], index: 3, kind: input, shape index: {}]
  %s4 = inlined_call_operand.vmem [shape: bf16[128,16], index: 4, kind: output, shape index: {0}]
  %s5 = inlined_call_operand.vmem [shape: bf16[128,16], index: 5, kind: output, shape index: {1}]
  %6 = xla_tuple %s4, %s5
  %s7 = sld [smem:[#allocation0]]
  $region57: #{tpu_custom_call.1} parent=0
    _
  %s9 = ssub.s32 1, %s7
  %s10 = scalar_select 0, %s9, %s7
  loop: start=0, step=1, limit=4
  $region2: #{tpu_custom_call.1} parent=0 // loop_pre_header
    _
  $region3: #{tpu_custom_call.1} parent=0 // loop_header
    %s12 = sphi 0, %s16
    %p13 = scmp.ge.s32.totalorder %s12, 4
    %s19 = sphi 0, %s31
    %s20 = sphi 0, %s27
    %s21 = sphi 0, %s19
    %s22 = sphi 0, %s20
    %s23 = sphi 0, %s21
    %s24 = sphi 0, %s22
    %s34 = sphi 0, %s36
    %s37 = sphi 0, %s34
    %s38 = sphi 0, %s37
    %s54 = sphi 0, %s38
    %s60 = sphi 0, %s62
    %s63 = sphi 0, %s60
    %s64 = sphi 0, %s63
    %s80 = sphi 0, %s64
    %s86 = sphi 0, %s88
    %s89 = sphi 0, %s86
    %s90 = sphi 0, %s89
    %s106 = sphi 0, %s90
    %s112 = sphi 0, %s114
    %s115 = sphi 0, %s112
    %s116 = sphi 0, %s115
    %s132 = sphi 0, %s116
    %s140 = sphi 0, %s142
    %s143 = sphi 0, %s140
    %s144 = sphi 0, %s143
    %s160 = sphi 0, %s144
    %s168 = sphi 0, %s170
    %s171 = sphi 0, %s168
    %s172 = sphi 0, %s171
    %s188 = sphi 0, %s172
  $region4: #{tpu_custom_call.1} parent=0 // loop_header_branch
    %15 = sbr.rel (%p13) target = $region8
  $region5: #{tpu_custom_call.1} parent=0 // loop_body
    %s17 = ssub.s32 %s12, 1
    %s18 = ssub.s32 %s12, 2
    %s25 = sadd.s32 1, %s20
    %p26 = scmp.ge.s32.totalorder %s25, 1
    %s27 = scalar_select %p26, 0, %s25
    %s28 = sadd.s32 1, %s19
    %s29 = scalar_select %p26, %s28, %s19
    %p30 = scmp.ge.s32.totalorder %s29, 2
    %s31 = scalar_select %p30, 0, %s29
    %s32 = ssub.s32 %s19, %s31
    %p33 = scmp.eq.s32.totalorder %s32, 0
    %s35 = sadd.s32 %s34, 1
    %s36 = scalar_select %p33, %s34, %s35
    %p39 = pneg %p33
    %p40 = scmp.eq.s32.totalorder %s12, 1
    %p41 = por %p39, %p40
    %p42 = scmp.ne.s32.totalorder %s34, %s37
    %p43 = scmp.eq.s32.totalorder %s12, 0
    %p44 = por %p42, %p43
    %p45 = scmp.ne.s32.totalorder %s34, %s37
    %p46 = scmp.eq.s32.totalorder %s17, 1
    %p47 = por %p45, %p46
    %p48 = scmp.ne.s32.totalorder %s37, %s38
    %p49 = scmp.eq.s32.totalorder %s17, 0
    %p50 = por %p48, %p49
    %p51 = scmp.ne.s32.totalorder %s37, %s38
    %p52 = scmp.eq.s32.totalorder %s18, 1
    %p53 = por %p51, %p52
    %p55 = scmp.ne.s32.totalorder %s38, %s54
    %p56 = scmp.eq.s32.totalorder %s18, 0
    %p57 = por %p55, %p56
    %s58 = ssub.s32 %s20, %s27
    %p59 = scmp.eq.s32.totalorder %s58, 0
    %s61 = sadd.s32 %s60, 1
    %s62 = scalar_select %p59, %s60, %s61
    %p65 = pneg %p59
    %p66 = scmp.eq.s32.totalorder %s12, 1
    %p67 = por %p65, %p66
    %p68 = scmp.ne.s32.totalorder %s60, %s63
    %p69 = scmp.eq.s32.totalorder %s12, 0
    %p70 = por %p68, %p69
    %p71 = scmp.ne.s32.totalorder %s60, %s63
    %p72 = scmp.eq.s32.totalorder %s17, 1
    %p73 = por %p71, %p72
    %p74 = scmp.ne.s32.totalorder %s63, %s64
    %p75 = scmp.eq.s32.totalorder %s17, 0
    %p76 = por %p74, %p75
    %p77 = scmp.ne.s32.totalorder %s63, %s64
    %p78 = scmp.eq.s32.totalorder %s18, 1
    %p79 = por %p77, %p78
    %p81 = scmp.ne.s32.totalorder %s64, %s80
    %p82 = scmp.eq.s32.totalorder %s18, 0
    %p83 = por %p81, %p82
    %s84 = ssub.s32 %s20, %s27
    %p85 = scmp.eq.s32.totalorder %s84, 0
    %s87 = sadd.s32 %s86, 1
    %s88 = scalar_select %p85, %s86, %s87
    %p91 = pneg %p85
    %p92 = scmp.eq.s32.totalorder %s12, 1
    %p93 = por %p91, %p92
    %p94 = scmp.ne.s32.totalorder %s86, %s89
    %p95 = scmp.eq.s32.totalorder %s12, 0
    %p96 = por %p94, %p95
    %p97 = scmp.ne.s32.totalorder %s86, %s89
    %p98 = scmp.eq.s32.totalorder %s17, 1
    %p99 = por %p97, %p98
    %p100 = scmp.ne.s32.totalorder %s89, %s90
    %p101 = scmp.eq.s32.totalorder %s17, 0
    %p102 = por %p100, %p101
    %p103 = scmp.ne.s32.totalorder %s89, %s90
    %p104 = scmp.eq.s32.totalorder %s18, 1
    %p105 = por %p103, %p104
    %p107 = scmp.ne.s32.totalorder %s90, %s106
    %p108 = scmp.eq.s32.totalorder %s18, 0
    %p109 = por %p107, %p108
    %s110 = ssub.s32 %s20, %s27
    %p111 = scmp.eq.s32.totalorder %s110, 0
    %s113 = sadd.s32 %s112, 1
    %s114 = scalar_select %p111, %s112, %s113
    %p117 = pneg %p111
    %p118 = scmp.eq.s32.totalorder %s12, 1
    %p119 = por %p117, %p118
    %p120 = scmp.ne.s32.totalorder %s112, %s115
    %p121 = scmp.eq.s32.totalorder %s12, 0
    %p122 = por %p120, %p121
    %p123 = scmp.ne.s32.totalorder %s112, %s115
    %p124 = scmp.eq.s32.totalorder %s17, 1
    %p125 = por %p123, %p124
    %p126 = scmp.ne.s32.totalorder %s115, %s116
    %p127 = scmp.eq.s32.totalorder %s17, 0
    %p128 = por %p126, %p127
    %p129 = scmp.ne.s32.totalorder %s115, %s116
    %p130 = scmp.eq.s32.totalorder %s18, 1
    %p131 = por %p129, %p130
    %p133 = scmp.ne.s32.totalorder %s116, %s132
    %p134 = scmp.eq.s32.totalorder %s18, 0
    %p135 = por %p133, %p134
    %s136 = ssub.s32 %s19, %s31
    %s137 = ssub.s32 %s20, %s27
    %s138 = sor.u32 %s136, %s137
    %p139 = scmp.eq.s32.totalorder %s138, 0
    %s141 = sadd.s32 %s140, 1
    %s142 = scalar_select %p139, %s140, %s141
    %p145 = pneg %p139
    %p146 = scmp.eq.s32.totalorder %s12, 1
    %p147 = por %p145, %p146
    %p148 = scmp.ne.s32.totalorder %s140, %s143
    %p149 = scmp.eq.s32.totalorder %s12, 0
    %p150 = por %p148, %p149
    %p151 = scmp.ne.s32.totalorder %s140, %s143
    %p152 = scmp.eq.s32.totalorder %s17, 1
    %p153 = por %p151, %p152
    %p154 = scmp.ne.s32.totalorder %s143, %s144
    %p155 = scmp.eq.s32.totalorder %s17, 0
    %p156 = por %p154, %p155
    %p157 = scmp.ne.s32.totalorder %s143, %s144
    %p158 = scmp.eq.s32.totalorder %s18, 1
    %p159 = por %p157, %p158
    %p161 = scmp.ne.s32.totalorder %s144, %s160
    %p162 = scmp.eq.s32.totalorder %s18, 0
    %p163 = por %p161, %p162
    %s164 = ssub.s32 %s19, %s31
    %s165 = ssub.s32 %s20, %s27
    %s166 = sor.u32 %s164, %s165
    %p167 = scmp.eq.s32.totalorder %s166, 0
    %s169 = sadd.s32 %s168, 1
    %s170 = scalar_select %p167, %s168, %s169
    %p173 = pneg %p167
    %p174 = scmp.eq.s32.totalorder %s12, 1
    %p175 = por %p173, %p174
    %p176 = scmp.ne.s32.totalorder %s168, %s171
    %p177 = scmp.eq.s32.totalorder %s12, 0
    %p178 = por %p176, %p177
    %p179 = scmp.ne.s32.totalorder %s168, %s171
    %p180 = scmp.eq.s32.totalorder %s17, 1
    %p181 = por %p179, %p180
    %p182 = scmp.ne.s32.totalorder %s171, %s172
    %p183 = scmp.eq.s32.totalorder %s17, 0
    %p184 = por %p182, %p183
    %p185 = scmp.ne.s32.totalorder %s171, %s172
    %p186 = scmp.eq.s32.totalorder %s18, 1
    %p187 = por %p185, %p186
    %p189 = scmp.ne.s32.totalorder %s172, %s188
    %p190 = scmp.eq.s32.totalorder %s18, 0
    %p191 = por %p189, %p190
    %p192 = scmp.le.s32.totalorder 1, %s12
    %p193 = scmp.lt.s32.totalorder %s12, 3
    %p194 = pnand %p192, %p193
    %p195 = pneg %p194
    // Predicated region
    $region9: #{tpu_custom_call.1} parent=5 // pred_check
      _
    $region10: #{tpu_custom_call.1} parent=5 // pred_check_branch
      %197 = sbr.rel (%p194) target = $region12
    $region11: #{tpu_custom_call.1} parent=5 // pred_region
      %s198 = ssub.s32 %s12, 1
      // Predicated region
      $region13: #{tpu_custom_call.1} parent=11 // pred_check
        %p199 = pneg %p76
      $region14: #{tpu_custom_call.1} parent=11 // pred_check_branch
        %201 = sbr.rel (%p199) target = $region16
      $region15: #{tpu_custom_call.1} parent=11 // pred_region
        %p202 = scmp.lt.s32.totalorder %s22, 0
        %s203 = scalar_select %p202, %s22, 0
        %s204 = smul.addr %s203, 4
        %s205 = scalar_lea.vmem %s1, %s204
      $region16: #{tpu_custom_call.1} parent=11 // pred_fallthru
        _
      // Predicated region
      $region17: #{tpu_custom_call.1} parent=11 // pred_check
        %p206 = pneg %p102
      $region18: #{tpu_custom_call.1} parent=11 // pred_check_branch
        %208 = sbr.rel (%p206) target = $region20
      $region19: #{tpu_custom_call.1} parent=11 // pred_region
        %p209 = scmp.lt.s32.totalorder %s22, 0
        %s210 = scalar_select %p209, %s22, 0
        %s211 = scalar_lea.vmem %s2, %s210
      $region20: #{tpu_custom_call.1} parent=11 // pred_fallthru
        _
      // Predicated region
      $region21: #{tpu_custom_call.1} parent=11 // pred_check
        %p212 = pneg %p128
      $region22: #{tpu_custom_call.1} parent=11 // pred_check_branch
        %214 = sbr.rel (%p212) target = $region24
      $region23: #{tpu_custom_call.1} parent=11 // pred_region
        %p215 = scmp.lt.s32.totalorder %s22, 0
        %s216 = scalar_select %p215, %s22, 0
        %s217 = scalar_lea.vmem %s3, %s216
      $region24: #{tpu_custom_call.1} parent=11 // pred_fallthru
        _
    $region12: #{tpu_custom_call.1} parent=5 // pred_fallthru
      _
    %p218 = scmp.lt.s32.totalorder %s12, 2
    // Predicated region
    $region25: #{tpu_custom_call.1} parent=5 // pred_check
      %p219 = pneg %p218
    $region26: #{tpu_custom_call.1} parent=5 // pred_check_branch
      %221 = sbr.rel (%p219) target = $region28
    $region27: #{tpu_custom_call.1} parent=5 // pred_region
      // Predicated region
      $region29: #{tpu_custom_call.1} parent=27 // pred_check
        %p222 = pneg %p44
      $region30: #{tpu_custom_call.1} parent=27 // pred_check_branch
        %224 = sbr.rel (%p222) target = $region32
      $region31: #{tpu_custom_call.1} parent=27 // pred_region
        %s225 = smul.u32 8, %s19
        %p226 = scmp.lt.s32.totalorder %s225, 15
        %s227 = scalar_select %p226, %s225, 15
        %s228 = smul.addr %s227, 4
        %s229 = scalar_lea.vmem %s0, %s228
        %s230 = smul.u32 8, %s19
      $region32: #{tpu_custom_call.1} parent=27 // pred_fallthru
        _
    $region28: #{tpu_custom_call.1} parent=5 // pred_fallthru
      _
    %p231 = scmp.le.s32.totalorder 1, %s12
    %p232 = scmp.lt.s32.totalorder %s12, 3
    %p233 = pnand %p231, %p232
    %p234 = pneg %p233
    // Predicated region
    $region33: #{tpu_custom_call.1} parent=5 // pred_check
      _
    $region34: #{tpu_custom_call.1} parent=5 // pred_check_branch
      %236 = sbr.rel (%p233) target = $region36
    $region35: #{tpu_custom_call.1} parent=5 // pred_region
      %s237 = ssub.s32 %s12, 1
      %s238 = smul.u32 8, %s21
      %p239 = scmp.lt.s32.totalorder %s238, 15
      %s240 = scalar_select %p239, %s238, 15
      %s241 = smul.addr %s240, 4
      %s242 = scalar_lea.vmem %s0, %s241
      %p243 = pneg %p50
      %p244 = pneg %p47
      %p245 = scmp.lt.s32.totalorder %s22, 0
      %s246 = scalar_select %p245, %s22, 0
      %s247 = smul.addr %s246, 4
      %s248 = scalar_lea.vmem %s1, %s247
      %p249 = pneg %p76
      %p250 = pneg %p73
      %p251 = scmp.lt.s32.totalorder %s22, 0
      %s252 = scalar_select %p251, %s22, 0
      %s253 = scalar_lea.vmem %s2, %s252
      %p254 = pneg %p102
      %p255 = pneg %p99
      %p256 = scmp.lt.s32.totalorder %s22, 0
      %s257 = scalar_select %p256, %s22, 0
      %s258 = scalar_lea.vmem %s3, %s257
      %p259 = pneg %p128
      %p260 = pneg %p125
      %p261 = pneg %p156
      %p262 = pneg %p153
      %s263 = smul.u32 8, %s21
      %p264 = scmp.lt.s32.totalorder %s263, 15
      %s265 = scalar_select %p264, %s263, 15
      %p266 = scmp.lt.s32.totalorder %s22, 0
      %s267 = scalar_select %p266, %s22, 0
      %s268 = sadd.s32 %s267, %s265
      %s269 = smul.addr %s268, 4
      %s270 = scalar_lea.vmem %s4, %s269
      %p271 = pneg %p184
      %p272 = pneg %p181
      %s273 = smul.u32 8, %s21
      %p274 = scmp.lt.s32.totalorder %s273, 15
      %s275 = scalar_select %p274, %s273, 15
      %p276 = scmp.lt.s32.totalorder %s22, 0
      %s277 = scalar_select %p276, %s22, 0
      %s278 = sadd.s32 %s277, %s275
      %s279 = smul.addr %s278, 4
      %s280 = scalar_lea.vmem %s5, %s279
      %s281 = smul.u32 8, %s21
      %p282 = scmp.lt.s32.totalorder %s281, 15
      %s283 = scalar_select %p282, %s281, 15
      %s284 = smul.addr %s283, 4
      %s285 = scalar_lea.vmem %s0, %s284
      %s286 = smul.u32 8, %s21
      %p287 = scmp.lt.s32.totalorder %s22, 0
      %s288 = scalar_select %p287, %s22, 0
      %s289 = smul.addr %s288, 4
      %s290 = scalar_lea.vmem %s1, %s289
      %p291 = scmp.lt.s32.totalorder %s22, 0
      %s292 = scalar_select %p291, %s22, 0
      %s293 = scalar_lea.vmem %s2, %s292
      %p294 = scmp.lt.s32.totalorder %s22, 0
      %s295 = scalar_select %p294, %s22, 0
      %s296 = scalar_lea.vmem %s3, %s295
      %s297 = smul.u32 8, %s21
      %p298 = scmp.lt.s32.totalorder %s297, 15
      %s299 = scalar_select %p298, %s297, 15
      %p300 = scmp.lt.s32.totalorder %s22, 0
      %s301 = scalar_select %p300, %s22, 0
      %s302 = sadd.s32 %s301, %s299
      %s303 = smul.addr %s302, 4
      %s304 = scalar_lea.vmem %s4, %s303
      %s305 = smul.u32 8, %s21
      %s306 = smul.u32 8, %s21
      %p307 = scmp.lt.s32.totalorder %s306, 15
      %s308 = scalar_select %p307, %s306, 15
      %p309 = scmp.lt.s32.totalorder %s22, 0
      %s310 = scalar_select %p309, %s22, 0
      %s311 = sadd.s32 %s310, %s308
      %s312 = smul.addr %s311, 4
      %s313 = scalar_lea.vmem %s5, %s312
      %s314 = smul.u32 8, %s21
      %v316 = vld [vmem:[%s285] sm:$0xf]
      %v317 = vld [vmem:[%s285 + $0x4] sm:$0xf]
      %v318 = vld [vmem:[%s285 + $0x8] sm:$0xf]
      %v319 = vld [vmem:[%s285 + $0xc] sm:$0xf]
      %v320 = vld [vmem:[%s285 + $0x10] sm:$0xf]
      %v321 = vld [vmem:[%s285 + $0x14] sm:$0xf]
      %v322 = vld [vmem:[%s285 + $0x18] sm:$0xf]
      %v323 = vld [vmem:[%s285 + $0x1c] sm:$0xf]
      %v324 = vld [vmem:[%s290] sm:$0xf]
      %v325 = vld [vmem:[%s290 + $0x4] sm:$0xf]
      %v326 = vld [vmem:[%s290 + $0x8] sm:$0xf]
      %v327 = vld [vmem:[%s290 + $0xc] sm:$0x3]
      %v336 = vunpack.c.l.b16 %v316
      %v337 = vunpack.c.l.b16 %v317
      %v338 = vunpack.c.l.b16 %v318
      %v339 = vunpack.c.l.b16 %v319
      %v340 = vunpack.c.l.b16 %v320
      %v341 = vunpack.c.l.b16 %v321
      %v342 = vunpack.c.l.b16 %v322
      %v343 = vunpack.c.l.b16 %v323
      %v344 = vpack.c.b16 %v337, %v336
      %v345 = vpack.c.b16 %v339, %v338
      %v346 = vpack.c.b16 %v341, %v340
      %v347 = vpack.c.b16 %v343, %v342
      %v352 = vunpack.c.l.b16 %v324
      %v353 = vunpack.c.l.b16 %v325
      %v354 = vunpack.c.l.b16 %v326
      %v355 = vunpack.c.l.b16 %v327
      %v356 = vpack.c.b16 %v353, %v352
      %v357 = vpack.c.b16 %v355, %v354
      %vm359 = vcmask 220160
      %v361 = vsel %vm359, %v344, 0
      %v364 = vsel %vm359, %v345, 0
      %v367 = vsel %vm359, %v346, 0
      %v370 = vsel %vm359, %v347, 0
      %vm372 = vcmask 1044480
      %vm373 = vcmask 1045504
      %v374 = vsel %vm372, 4294967295, 65535
      %v375 = vsel %vm373, %v374, 0
      %v377 = vand.u32 %v357, %v375
      %379 = vmatprep.subr.bf16.mxu0 0
      %380 = vmatpush1.bf16.msra.mxu0 0
      %381 = vmatprep.subr.bf16.mxu0 0
      %382 = vmatpush1.bf16.msra.mxu0 0
      %383 = vmatprep.subr.bf16.mxu0 0
      %384 = vmatpush1.bf16.msra.mxu0 0
      %385 = vmatprep.subr.bf16.mxu0 0
      %386 = vmatpush1.bf16.msra.mxu0 0
      %387 = vmatprep.subr.bf16.mxu0 0
      %388 = vmatpush1.bf16.msra.mxu0 0
      %389 = vmatprep.subr.bf16.mxu0 0
      %390 = vmatpush1.bf16.msra.mxu0 0
      %391 = vmatprep.subr.bf16.mxu0 0
      %392 = vmatpush1.bf16.msra.mxu0 %v377
      %393 = vmatprep.subr.bf16.mxu0 0
      %394 = vmatpush1.bf16.msra.mxu0 %v356
      %395 = vmatprep.subr.bf16.mxu0 0
      %396 = vmatpush2.bf16.msra.mxu0 0
      %397 = vmatprep.subr.bf16.mxu0 0
      %398 = vmatpush2.bf16.msra.mxu0 0
      %399 = vmatprep.subr.bf16.mxu0 0
      %400 = vmatpush2.bf16.msra.mxu0 0
      %401 = vmatprep.subr.bf16.mxu0 0
      %402 = vmatpush2.bf16.msra.mxu0 0
      %403 = vmatprep.subr.bf16.mxu0 0
      %404 = vmatpush2.bf16.msra.mxu0 0
      %405 = vmatprep.subr.bf16.mxu0 0
      %406 = vmatpush2.bf16.msra.mxu0 0
      %407 = vmatprep.subr.bf16.mxu0 0
      %408 = vmatpush2.bf16.msra.mxu0 0
      %409 = vmatprep.subr.bf16.mxu0 0
      %410 = vmatpush2.bf16.msra.mxu0 0
      %411 = vmatprep.mubr.bf16.mxu0 0
      %412 = vmatmul.mubr.bf16.gmra.mxu0 %v361
      %v413 = vpop.f32.mrf.mxu0
      %v414 = vadd.f32 0.0, %v413
      %v415 = vpop.f32.mrf.mxu0
      %v416 = vpop.f32.mrf.mxu0
      %v417 = vadd.f32 0.0, %v416
      %v418 = vpop.f32.mrf.mxu0
      %419 = vmatprep.mubr.bf16.mxu0 0
      %420 = vmatmul.mubr.bf16.gmra.mxu0 %v364
      %v421 = vpop.f32.mrf.mxu0
      %v422 = vadd.f32 0.0, %v421
      %v423 = vpop.f32.mrf.mxu0
      %v424 = vpop.f32.mrf.mxu0
      %v425 = vadd.f32 0.0, %v424
      %v426 = vpop.f32.mrf.mxu0
      %427 = vmatprep.mubr.bf16.mxu0 0
      %428 = vmatmul.mubr.bf16.gmra.mxu0 %v367
      %v429 = vpop.f32.mrf.mxu0
      %v430 = vadd.f32 0.0, %v429
      %v431 = vpop.f32.mrf.mxu0
      %v432 = vpop.f32.mrf.mxu0
      %v433 = vadd.f32 0.0, %v432
      %v434 = vpop.f32.mrf.mxu0
      %435 = vmatprep.mubr.bf16.mxu0 0
      %436 = vmatmul.mubr.bf16.gmra.mxu0 %v370
      %v437 = vpop.f32.mrf.mxu0
      %v438 = vadd.f32 0.0, %v437
      %v439 = vpop.f32.mrf.mxu0
      %v440 = vpop.f32.mrf.mxu0
      %v441 = vadd.f32 0.0, %v440
      %v442 = vpop.f32.mrf.mxu0
      %443 = vdwg.mxu0
      %v444 = vpack.c.bf16 %v417, %v414
      %v445 = vpack.c.bf16 %v425, %v422
      %v446 = vpack.c.bf16 %v433, %v430
      %v447 = vpack.c.bf16 %v441, %v438
      %v452 = vunpack.c.l.b16 %v444
      %v453 = vunpack.c.h.b16 %v444
      %v454 = vunpack.c.l.b16 %v445
      %v455 = vunpack.c.h.b16 %v445
      %v456 = vunpack.c.l.b16 %v446
      %v457 = vunpack.c.h.b16 %v446
      %v458 = vunpack.c.l.b16 %v447
      %v459 = vunpack.c.h.b16 %v447
      %v460 = vpack.c.b16 %v452, %v452
      %v461 = vpack.c.b16 %v453, %v453
      %v462 = vpack.c.b16 %v454, %v454
      %v463 = vpack.c.b16 %v455, %v455
      %v464 = vpack.c.b16 %v456, %v456
      %v465 = vpack.c.b16 %v457, %v457
      %v466 = vpack.c.b16 %v458, %v458
      %v467 = vpack.c.b16 %v459, %v459
      %vm476 = vcmask 125952
      %477 = vst.msk [vmem:[%s304] sm:$0xf] %vm476, %v460
      %478 = vst.msk [vmem:[%s304 + $0x4] sm:$0xf] %vm476, %v461
      %479 = vst.msk [vmem:[%s304 + $0x8] sm:$0xf] %vm476, %v462
      %480 = vst.msk [vmem:[%s304 + $0xc] sm:$0xf] %vm476, %v463
      %481 = vst.msk [vmem:[%s304 + $0x10] sm:$0xf] %vm476, %v464
      %482 = vst.msk [vmem:[%s304 + $0x14] sm:$0xf] %vm476, %v465
      %483 = vst.msk [vmem:[%s304 + $0x18] sm:$0xf] %vm476, %v466
      %484 = vst.msk [vmem:[%s304 + $0x1c] sm:$0xf] %vm476, %v467
      %v485 = vld [vmem:[%s293] sm:$0x1]
      %v487 = vlaneseq
      %v488 = vshrl.u32 %v487, 7
      %v489 = vsub.s32 0, %v488
      %v490 = vrot.slane %v485, %v489
      %v492 = vmul.f32 %v414, %v490
      %v493 = vmul.f32 %v417, %v490
      %v494 = vmul.f32 %v422, %v490
      %v495 = vmul.f32 %v425, %v490
      %v496 = vmul.f32 %v430, %v490
      %v497 = vmul.f32 %v433, %v490
      %v498 = vmul.f32 %v438, %v490
      %v499 = vmul.f32 %v441, %v490
      %v500 = vld [vmem:[%s296] sm:$0x1]
      %v502 = vlaneseq
      %v503 = vshrl.u32 %v502, 7
      %v504 = vsub.s32 0, %v503
      %v505 = vrot.slane %v500, %v504
      %v507 = vadd.f32 %v492, %v505
      %v508 = vadd.f32 %v493, %v505
      %v509 = vadd.f32 %v494, %v505
      %v510 = vadd.f32 %v495, %v505
      %v511 = vadd.f32 %v496, %v505
      %v512 = vadd.f32 %v497, %v505
      %v513 = vadd.f32 %v498, %v505
      %v514 = vadd.f32 %v499, %v505
      %v515 = vmax.f32 %v507, 0.0
      %v516 = vmax.f32 %v508, 0.0
      %v517 = vmax.f32 %v509, 0.0
      %v518 = vmax.f32 %v510, 0.0
      %v519 = vmax.f32 %v511, 0.0
      %v520 = vmax.f32 %v512, 0.0
      %v521 = vmax.f32 %v513, 0.0
      %v522 = vmax.f32 %v514, 0.0
      %v523 = vpack.c.bf16 %v516, %v515
      %v524 = vpack.c.bf16 %v518, %v517
      %v525 = vpack.c.bf16 %v520, %v519
      %v526 = vpack.c.bf16 %v522, %v521
      %v531 = vunpack.c.l.b16 %v523
      %v532 = vunpack.c.h.b16 %v523
      %v533 = vunpack.c.l.b16 %v524
      %v534 = vunpack.c.h.b16 %v524
      %v535 = vunpack.c.l.b16 %v525
      %v536 = vunpack.c.h.b16 %v525
      %v537 = vunpack.c.l.b16 %v526
      %v538 = vunpack.c.h.b16 %v526
      %v539 = vpack.c.b16 %v531, %v531
      %v540 = vpack.c.b16 %v532, %v532
      %v541 = vpack.c.b16 %v533, %v533
      %v542 = vpack.c.b16 %v534, %v534
      %v543 = vpack.c.b16 %v535, %v535
      %v544 = vpack.c.b16 %v536, %v536
      %v545 = vpack.c.b16 %v537, %v537
      %v546 = vpack.c.b16 %v538, %v538
      %555 = vst.msk [vmem:[%s313] sm:$0xf] %vm476, %v539
      %556 = vst.msk [vmem:[%s313 + $0x4] sm:$0xf] %vm476, %v540
      %557 = vst.msk [vmem:[%s313 + $0x8] sm:$0xf] %vm476, %v541
      %558 = vst.msk [vmem:[%s313 + $0xc] sm:$0xf] %vm476, %v542
      %559 = vst.msk [vmem:[%s313 + $0x10] sm:$0xf] %vm476, %v543
      %560 = vst.msk [vmem:[%s313 + $0x14] sm:$0xf] %vm476, %v544
      %561 = vst.msk [vmem:[%s313 + $0x18] sm:$0xf] %vm476, %v545
      %562 = vst.msk [vmem:[%s313 + $0x1c] sm:$0xf] %vm476, %v546
      %s563 = smul.u32 8, %s21
      %p564 = scmp.lt.s32.totalorder %s563, 15
      %s565 = scalar_select %p564, %s563, 15
      %p566 = scmp.lt.s32.totalorder %s22, 0
      %s567 = scalar_select %p566, %s22, 0
      %s568 = sadd.s32 %s567, %s565
      %s569 = smul.addr %s568, 4
      %s570 = scalar_lea.vmem %s4, %s569
      %s571 = smul.u32 8, %s21
      %p572 = scmp.lt.s32.totalorder %s571, 15
      %s573 = scalar_select %p572, %s571, 15
      %p574 = scmp.lt.s32.totalorder %s22, 0
      %s575 = scalar_select %p574, %s22, 0
      %s576 = sadd.s32 %s575, %s573
      %s577 = smul.addr %s576, 4
      %s578 = scalar_lea.vmem %s5, %s577
      // Predicated region
      $region37: #{tpu_custom_call.1} parent=35 // pred_check
        %p579 = pneg %p153
      $region38: #{tpu_custom_call.1} parent=35 // pred_check_branch
        %581 = sbr.rel (%p579) target = $region40
      $region39: #{tpu_custom_call.1} parent=35 // pred_region
        %s582 = smul.u32 8, %s21
      $region40: #{tpu_custom_call.1} parent=35 // pred_fallthru
        _
      // Predicated region
      $region41: #{tpu_custom_call.1} parent=35 // pred_check
        %p583 = pneg %p181
      $region42: #{tpu_custom_call.1} parent=35 // pred_check_branch
        %585 = sbr.rel (%p583) target = $region44
      $region43: #{tpu_custom_call.1} parent=35 // pred_region
        %s586 = smul.u32 8, %s21
      $region44: #{tpu_custom_call.1} parent=35 // pred_fallthru
        _
    $region36: #{tpu_custom_call.1} parent=5 // pred_fallthru
      _
    %p587 = scmp.le.s32.totalorder 2, %s12
    // Predicated region
    $region45: #{tpu_custom_call.1} parent=5 // pred_check
      %p588 = pneg %p587
    $region46: #{tpu_custom_call.1} parent=5 // pred_check_branch
      %590 = sbr.rel (%p588) target = $region48
    $region47: #{tpu_custom_call.1} parent=5 // pred_region
      %s591 = ssub.s32 %s12, 2
      // Predicated region
      $region49: #{tpu_custom_call.1} parent=47 // pred_check
        %p592 = pneg %p159
      $region50: #{tpu_custom_call.1} parent=47 // pred_check_branch
        %594 = sbr.rel (%p592) target = $region52
      $region51: #{tpu_custom_call.1} parent=47 // pred_region
        %s595 = smul.u32 8, %s23
        %p596 = scmp.lt.s32.totalorder %s595, 15
        %s597 = scalar_select %p596, %s595, 15
        %p598 = scmp.lt.s32.totalorder %s24, 0
        %s599 = scalar_select %p598, %s24, 0
        %s600 = sadd.s32 %s599, %s597
        %s601 = smul.addr %s600, 4
        %s602 = scalar_lea.vmem %s4, %s601
      $region52: #{tpu_custom_call.1} parent=47 // pred_fallthru
        _
      // Predicated region
      $region53: #{tpu_custom_call.1} parent=47 // pred_check
        %p603 = pneg %p187
      $region54: #{tpu_custom_call.1} parent=47 // pred_check_branch
        %605 = sbr.rel (%p603) target = $region56
      $region55: #{tpu_custom_call.1} parent=47 // pred_region
        %s606 = smul.u32 8, %s23
        %p607 = scmp.lt.s32.totalorder %s606, 15
        %s608 = scalar_select %p607, %s606, 15
        %p609 = scmp.lt.s32.totalorder %s24, 0
        %s610 = scalar_select %p609, %s24, 0
        %s611 = sadd.s32 %s610, %s608
        %s612 = smul.addr %s611, 4
        %s613 = scalar_lea.vmem %s5, %s612
      $region56: #{tpu_custom_call.1} parent=47 // pred_fallthru
        _
    $region48: #{tpu_custom_call.1} parent=5 // pred_fallthru
      _
  $region6: #{tpu_custom_call.1} parent=0 // loop_footer
    %s16 = sadd.s32 1, %s12
  $region7: #{tpu_custom_call.1} parent=0 // loop_footer_branch
    %11 = sbr.rel target = $region3
  $region8: #{tpu_custom_call.1} parent=0 // loop_exit
    _

</llo_original>
